<compile_context>
chip_gen: v5e
topology: v5e:2x2
jax: 0.10.0
libtpu: 0.0.40
codegen_flags: <defaults>
</compile_context>

<pallas_src>
import functools

import jax
import jax.numpy as jnp
from jax.experimental import pallas as pl
from jax.experimental.pallas import tpu as pltpu

num_classes = 10


def _round_up(v, m):
    return ((v + m - 1) // m) * m


def mlp_kernel(x_ref, w1_ref, b1_ref, w2_ref, b2_ref, o_ref):
    # Cast the x tile to the weight dtype (bf16) on the VPU: x stays f32 in
    # HBM, so no padded/cast copy is ever materialized.
    x = x_ref[...].astype(w1_ref.dtype)
    # First linear layer: bf16 MXU matmul, f32 accumulation, bias fused as the
    # accumulator initializer (broadcast over the batch tile).
    h = b1_ref[...] + jnp.dot(x, w1_ref[...], preferred_element_type=jnp.float32)
    # ReLU in f32 on the VPU (safe on v5e, which lacks bf16 VPU).
    h = jnp.maximum(h, 0.0)
    # Second linear layer: cast activations to bf16 for the MXU, f32 acc,
    # bias fused as accumulator init.
    out = b2_ref[...] + jnp.dot(
        h.astype(w2_ref.dtype), w2_ref[...], preferred_element_type=jnp.float32
    )
    # Store directly in the final output dtype / final (unpadded) shape.
    o_ref[...] = out.astype(o_ref.dtype)


def prepare_params(w1, b1, w2, b2):
    """One-time parameter prep, hoisted out of the per-call forward.

    Casts weights to bf16 for the MXU and reshapes biases to f32 (1, N) rows.
    Call this once (e.g. at init / checkpoint load), not per step.
    """
    return (
        w1.astype(jnp.bfloat16),
        b1.astype(jnp.float32).reshape(1, -1),
        w2.astype(jnp.bfloat16),
        b2.astype(jnp.float32).reshape(1, -1),
    )


@functools.partial(jax.jit, static_argnames=("block_batch",))
def mlp_forward(x, w1, b1, w2, b2, *, block_batch=1024):
    """Fused forward pass: relu(x @ w1 + b1) @ w2 + b2.

    x: (batch, inp) f32 (or bf16).  w1: (inp, hid) bf16, b1: (1, hid) f32,
    w2: (hid, ncls) bf16, b2: (1, ncls) f32 — as produced by prepare_params().
    Returns (batch, ncls) in x.dtype.
    """
    batch, inp = x.shape
    hid = w1.shape[1]
    ncls = w2.shape[1]
    out_dtype = x.dtype

    # Batch tile: large enough to amortize the ~0.35 us/step overhead, capped
    # at ~half the batch (8-row aligned) so the grid has >= 2 steps whenever
    # batch >= 16 and v7x's second TensorCore isn't idle.  The last block may
    # be partial; Pallas masks its store.
    half_batch = _round_up(pl.cdiv(batch, 2), 8)
    tb = max(8, min(block_batch, half_batch))
    grid = (pl.cdiv(batch, tb),)

    cost = pl.CostEstimate(
        flops=2 * batch * (inp * hid + hid * ncls),
        transcendentals=0,
        bytes_accessed=(
            x.size * x.dtype.itemsize
            + w1.size * w1.dtype.itemsize
            + b1.size * b1.dtype.itemsize
            + w2.size * w2.dtype.itemsize
            + b2.size * b2.dtype.itemsize
            + batch * ncls * jnp.dtype(out_dtype).itemsize
        ),
    )

    return pl.pallas_call(
        mlp_kernel,
        out_shape=jax.ShapeDtypeStruct((batch, ncls), out_dtype),
        grid=grid,
        in_specs=[
            # x: tiled over the batch grid (pipeline double-buffers it); the
            # block spans the full feature dim, so no 128-padding is needed.
            pl.BlockSpec((tb, inp), lambda i: (i, 0)),
            # Weights / biases: same block every step -> VMEM-resident.
            pl.BlockSpec((inp, hid), lambda i: (0, 0)),
            pl.BlockSpec((1, hid), lambda i: (0, 0)),
            pl.BlockSpec((hid, ncls), lambda i: (0, 0)),
            pl.BlockSpec((1, ncls), lambda i: (0, 0)),
        ],
        # Output in final dtype/shape; the narrow (ncls) store is masked but
        # avoids the padded-output + slice/cast round trip entirely.
        out_specs=pl.BlockSpec((tb, ncls), lambda i: (i, 0)),
        compiler_params=pltpu.CompilerParams(
            # Batch tiles are independent: shard across v7x's 2 TensorCores.
            dimension_semantics=("parallel",),
        ),
        cost_estimate=cost,
    )(x, w1, b1, w2, b2)


def init_linear_params(key, fan_in, fan_out, dtype=jnp.float32):
    """Deterministic init mimicking PyTorch nn.Linear (uniform +/- 1/sqrt(fan_in))."""
    kw, kb = jax.random.split(key)
    bound = 1.0 / jnp.sqrt(fan_in)
    w = jax.random.uniform(kw, (fan_in, fan_out), dtype, minval=-bound, maxval=bound)
    b = jax.random.uniform(kb, (fan_out,), dtype, minval=-bound, maxval=bound)
    return w, b


if __name__ == "__main__":
    # Small shapes consistent with NN(inp_size, hid_size, num_classes).
    batch, inp_size, hid_size = 8, 32, 32

    key = jax.random.PRNGKey(0)
    kx, k1, k2 = jax.random.split(key, 3)

    x = jax.random.normal(kx, (batch, inp_size), jnp.float32)
    w1, b1 = init_linear_params(k1, inp_size, hid_size)
    w2, b2 = init_linear_params(k2, hid_size, num_classes)

    # One-time prep (bf16 weights, (1, N) f32 bias rows), then the forward.
    params = prepare_params(w1, b1, w2, b2)
    out = mlp_forward(x, *params)
    out = jax.block_until_ready(out)
    assert out.shape == (batch, num_classes)
    assert out.dtype == x.dtype

    # Reference matched to the kernel's numerics (bf16 matmul inputs, f32
    # accumulation, f32 bias/ReLU).
    xb = x.astype(jnp.bfloat16)
    w1b = w1.astype(jnp.bfloat16)
    w2b = w2.astype(jnp.bfloat16)
    h_ref = jnp.maximum(
        jnp.dot(xb, w1b, preferred_element_type=jnp.float32) + b1, 0.0
    )
    ref = jnp.dot(
        h_ref.astype(jnp.bfloat16), w2b, preferred_element_type=jnp.float32
    ) + b2
    assert jnp.allclose(out, ref, atol=1e-3, rtol=1e-3)

    # Sanity check against the full-f32 reference (loose, bf16 rounding).
    ref_f32 = jnp.maximum(x @ w1 + b1, 0.0) @ w2 + b2
    assert jnp.allclose(out, ref_f32, atol=5e-2, rtol=5e-2)

    print("KERNEL_OK")
</pallas_src>

<mosaic_0001>
module attributes {stable_mosaic.version = 11 : i64} {
  func.func @mlp_kernel(%arg0: i32, %arg1: memref<8x32xf32, #tpu.memory_space<vmem>>, %arg2: memref<32x32xbf16, #tpu.memory_space<vmem>>, %arg3: memref<1x32xf32, #tpu.memory_space<vmem>>, %arg4: memref<32x10xbf16, #tpu.memory_space<vmem>>, %arg5: memref<1x10xf32, #tpu.memory_space<vmem>>, %arg6: memref<8x10xf32, #tpu.memory_space<vmem>>) attributes {dimension_semantics = [#tpu.dimension_semantics<parallel>], iteration_bounds = array<i64: 1>, scalar_prefetch = 0 : i64, scratch_operands = 0 : i64, tpu.core_type = #tpu.core_type<tc>, window_params = [{transform_indices = @transform_0, window_bounds = array<i64: 8, 32>}, {pipeline_mode = #tpu.pipeline_mode<synchronous>, transform_indices = @transform_1, window_bounds = array<i64: 32, 32>}, {pipeline_mode = #tpu.pipeline_mode<synchronous>, transform_indices = @transform_2, window_bounds = array<i64: 1, 32>}, {pipeline_mode = #tpu.pipeline_mode<synchronous>, transform_indices = @transform_3, window_bounds = array<i64: 32, 10>}, {pipeline_mode = #tpu.pipeline_mode<synchronous>, transform_indices = @transform_4, window_bounds = array<i64: 1, 10>}, {transform_indices = @transform_5, window_bounds = array<i64: 8, 10>}]} {
    %c0 = arith.constant 0 : index
    %c0_0 = arith.constant 0 : index
    %0 = vector.load %arg1[%c0, %c0_0] : memref<8x32xf32, #tpu.memory_space<vmem>>, vector<8x32xf32>
    %1 = arith.truncf %0 : vector<8x32xf32> to vector<8x32xbf16>
    %c0_1 = arith.constant 0 : index
    %c0_2 = arith.constant 0 : index
    %2 = vector.load %arg3[%c0_1, %c0_2] : memref<1x32xf32, #tpu.memory_space<vmem>>, vector<1x32xf32>
    %c0_3 = arith.constant 0 : index
    %c0_4 = arith.constant 0 : index
    %3 = vector.load %arg2[%c0_3, %c0_4] : memref<32x32xbf16, #tpu.memory_space<vmem>>, vector<32x32xbf16>
    %cst = arith.constant dense<0.000000e+00> : vector<8x32xf32>
    %4 = tpu.matmul %1, %3, %cst {dimension_numbers = #tpu.dot_dimension_numbers<[1], [0], [0], [1], [0, 0, 1, 1], [], []>} : vector<8x32xbf16>, vector<32x32xbf16>, vector<8x32xf32> -> vector<8x32xf32>
    %5 = vector.broadcast %2 : vector<1x32xf32> to vector<8x32xf32>
    %6 = arith.addf %5, %4 : vector<8x32xf32>
    %cst_5 = arith.constant 0.000000e+00 : f32
    %7 = vector.broadcast %cst_5 : f32 to vector<8x32xf32>
    %8 = arith.maximumf %6, %7 : vector<8x32xf32>
    %c0_6 = arith.constant 0 : index
    %c0_7 = arith.constant 0 : index
    %9 = vector.load %arg5[%c0_6, %c0_7] : memref<1x10xf32, #tpu.memory_space<vmem>>, vector<1x10xf32>
    %10 = arith.truncf %8 : vector<8x32xf32> to vector<8x32xbf16>
    %c0_8 = arith.constant 0 : index
    %c0_9 = arith.constant 0 : index
    %11 = vector.load %arg4[%c0_8, %c0_9] : memref<32x10xbf16, #tpu.memory_space<vmem>>, vector<32x10xbf16>
    %cst_10 = arith.constant dense<0.000000e+00> : vector<8x10xf32>
    %12 = tpu.matmul %10, %11, %cst_10 {dimension_numbers = #tpu.dot_dimension_numbers<[1], [0], [0], [1], [0, 0, 1, 1], [], []>} : vector<8x32xbf16>, vector<32x10xbf16>, vector<8x10xf32> -> vector<8x10xf32>
    %13 = vector.broadcast %9 : vector<1x10xf32> to vector<8x10xf32>
    %14 = arith.addf %13, %12 : vector<8x10xf32>
    %c0_11 = arith.constant 0 : index
    %c0_12 = arith.constant 0 : index
    %15 = vector.load %arg6[%c0_11, %c0_12] : memref<8x10xf32, #tpu.memory_space<vmem>>, vector<8x10xf32>
    tpu.vector_store %arg6[%c0_11, %c0_12], %14 {strides = array<i32>} : memref<8x10xf32, #tpu.memory_space<vmem>>, vector<8x10xf32>,
    return
  }
  func.func @transform_0(%arg0: i32) -> (i32, i32) {
    %c0_i32 = arith.constant 0 : i32
    %c0_i32_0 = arith.constant 0 : i32
    return %arg0, %c0_i32 : i32, i32
  }
  func.func @transform_1(%arg0: i32) -> (i32, i32) {
    %c0_i32 = arith.constant 0 : i32
    %c0_i32_0 = arith.constant 0 : i32
    %c0_i32_1 = arith.constant 0 : i32
    return %c0_i32, %c0_i32_0 : i32, i32
  }
  func.func @transform_2(%arg0: i32) -> (i32, i32) {
    %c0_i32 = arith.constant 0 : i32
    %c0_i32_0 = arith.constant 0 : i32
    %c0_i32_1 = arith.constant 0 : i32
    return %c0_i32, %c0_i32_0 : i32, i32
  }
  func.func @transform_3(%arg0: i32) -> (i32, i32) {
    %c0_i32 = arith.constant 0 : i32
    %c0_i32_0 = arith.constant 0 : i32
    %c0_i32_1 = arith.constant 0 : i32
    return %c0_i32, %c0_i32_0 : i32, i32
  }
  func.func @transform_4(%arg0: i32) -> (i32, i32) {
    %c0_i32 = arith.constant 0 : i32
    %c0_i32_0 = arith.constant 0 : i32
    %c0_i32_1 = arith.constant 0 : i32
    return %c0_i32, %c0_i32_0 : i32, i32
  }
  func.func @transform_5(%arg0: i32) -> (i32, i32) {
    %c0_i32 = arith.constant 0 : i32
    %c0_i32_0 = arith.constant 0 : i32
    return %arg0, %c0_i32 : i32, i32
  }
}

</mosaic_0001>

<llo_original>
// kernel: mlp_forward.1
$region0: #{mlp_forward.1}
  #allocation0 [shape = 'u32[]', space=smem, size = 0x4, offset = 0x4, fixed_abs, tag = 'smem constant byte address 0x4 - core index']
  #allocation1 [shape = 'u32[72,128]{1,0:T(1,128)}', space=vmem, size = 0x9000, scoped, tag = 'internal scratch']
  %s0 = inlined_call_operand.vmem [shape: f32[8,32], index: 0, kind: input, shape index: {}]
  %s1 = inlined_call_operand.vmem [shape: bf16[32,32], index: 1, kind: input, shape index: {}]
  %s2 = inlined_call_operand.vmem [shape: f32[1,32], index: 2, kind: input, shape index: {}]
  %s3 = inlined_call_operand.vmem [shape: bf16[32,10], index: 3, kind: input, shape index: {}]
  %s4 = inlined_call_operand.vmem [shape: f32[1,10], index: 4, kind: input, shape index: {}]
  %s5 = inlined_call_operand.hbm [shape: f32[8,10], index: 5, kind: output, shape index: {}]
  %s6 = sld [smem:[#allocation0]]
  $region30: #{mlp_forward.1} parent=0
    _
  %s8 = ssub.s32 1, %s6
  %s9 = scalar_select 0, %s8, %s6
  $region1: #{mlp_forward.1} parent=0
    #allocation2 [shape = 'u8[4096]{0}', space=vmem, size = 0x1000, scoped, tag = 'output window, operand 0, single buffered']
    #allocation3 [shape = 's32[1]{0}', space=sflag, size = 0x4, scoped, tag = 'scoped memory for mlp_forward.1']
    %10 = vsyncpa [#allocation3], 0
    // Predicated region
    $region2: #{mlp_forward.1} parent=1 // pred_check
      _
    $region3: #{mlp_forward.1} parent=1 // pred_check_branch
      %12 = sbr.rel (0) target = $region5
    $region4: #{mlp_forward.1} parent=1 // pred_region
      _
    $region5: #{mlp_forward.1} parent=1 // pred_fallthru
      _
    // Predicated region
    $region6: #{mlp_forward.1} parent=1 // pred_check
      _
    $region7: #{mlp_forward.1} parent=1 // pred_check_branch
      %14 = sbr.rel (0) target = $region9
    $region8: #{mlp_forward.1} parent=1 // pred_region
      _
    $region9: #{mlp_forward.1} parent=1 // pred_fallthru
      _
    // Predicated region
    $region10: #{mlp_forward.1} parent=1 // pred_check
      _
    $region11: #{mlp_forward.1} parent=1 // pred_check_branch
      %16 = sbr.rel (0) target = $region13
    $region12: #{mlp_forward.1} parent=1 // pred_region
      _
    $region13: #{mlp_forward.1} parent=1 // pred_fallthru
      _
    // Predicated region
    $region14: #{mlp_forward.1} parent=1 // pred_check
      _
    $region15: #{mlp_forward.1} parent=1 // pred_check_branch
      %18 = sbr.rel (0) target = $region17
    $region16: #{mlp_forward.1} parent=1 // pred_region
      _
    $region17: #{mlp_forward.1} parent=1 // pred_fallthru
      _
    // Predicated region
    $region18: #{mlp_forward.1} parent=1 // pred_check
      _
    $region19: #{mlp_forward.1} parent=1 // pred_check_branch
      %20 = sbr.rel (0) target = $region21
    $region20: #{mlp_forward.1} parent=1 // pred_region
      _
    $region21: #{mlp_forward.1} parent=1 // pred_fallthru
      _
    %v22 = vld [vmem:[%s0] sm:$0xff]
    %v23 = vpack.c.bf16 %v22, %v22
    %v24 = vld [vmem:[%s2] sm:$0x1]
    %v25 = vld [vmem:[%s1] sm:$0xf]
    %v26 = vld [vmem:[%s1 + $0x4] sm:$0xf]
    %v27 = vld [vmem:[%s1 + $0x8] sm:$0xf]
    %v28 = vld [vmem:[%s1 + $0xc] sm:$0xf]
    %v33 = vunpack.c.l.b16 %v25
    %v34 = vunpack.c.l.b16 %v26
    %v35 = vunpack.c.l.b16 %v27
    %v36 = vunpack.c.l.b16 %v28
    %v37 = vpack.c.b16 %v34, %v33
    %v38 = vpack.c.b16 %v36, %v35
    %vm41 = vcmask 261120
    %v43 = vsel %vm41, %v23, 0
    %45 = vmatpush.bf16.msra.mxu0 0
    %46 = vmatpush.bf16.msra.mxu0 0
    %47 = vmatpush.bf16.msra.mxu0 0
    %48 = vmatpush.bf16.msra.mxu0 0
    %49 = vmatpush.bf16.msra.mxu0 0
    %50 = vmatpush.bf16.msra.mxu0 0
    %51 = vmatpush.bf16.msra.mxu0 %v38
    %52 = vmatpush.bf16.msra.mxu0 %v37
    %53 = vmatmul.bf16.gmra.mxu0 %v43
    %v54 = vpop.f32.mrf.mxu0
    %v55 = vadd.f32 0.0, %v54
    %v56 = vpop.f32.mrf.mxu0
    %57 = vdwg.mxu0
    %v59 = vperm.slane %v24, 0
    %v61 = vadd.f32 %v59, %v55
    %v62 = vmax.f32 %v61, 0.0
    %v63 = vld [vmem:[%s4] sm:$0x1]
    %v64 = vpack.c.bf16 %v62, %v62
    %v65 = vld [vmem:[%s3] sm:$0xf]
    %v66 = vld [vmem:[%s3 + $0x4] sm:$0xf]
    %v67 = vld [vmem:[%s3 + $0x8] sm:$0xf]
    %v68 = vld [vmem:[%s3 + $0xc] sm:$0xf]
    %v73 = vunpack.c.l.b16 %v65
    %v74 = vunpack.c.l.b16 %v66
    %v75 = vunpack.c.l.b16 %v67
    %v76 = vunpack.c.l.b16 %v68
    %v77 = vpack.c.b16 %v74, %v73
    %v78 = vpack.c.b16 %v76, %v75
    %v82 = vsel %vm41, %v64, 0
    %84 = vmatpush.bf16.msra.mxu0 0
    %85 = vmatpush.bf16.msra.mxu0 0
    %86 = vmatpush.bf16.msra.mxu0 0
    %87 = vmatpush.bf16.msra.mxu0 0
    %88 = vmatpush.bf16.msra.mxu0 0
    %89 = vmatpush.bf16.msra.mxu0 0
    %90 = vmatpush.bf16.msra.mxu0 %v78
    %91 = vmatpush.bf16.msra.mxu0 %v77
    %92 = vmatmul.bf16.gmra.mxu0 %v82
    %v93 = vpop.f32.mrf.mxu0
    %v94 = vadd.f32 0.0, %v93
    %v95 = vpop.f32.mrf.mxu0
    %96 = vdwg.mxu0
    %v98 = vperm.slane %v63, 0
    %v100 = vadd.f32 %v98, %v94
    %vm101 = vcmask 80896
    %102 = vst.msk [vmem:[#allocation2] sm:$0xff] %vm101, %v100
    // Predicated region
    $region22: #{mlp_forward.1} parent=1 // pred_check
      _
    $region23: #{mlp_forward.1} parent=1 // pred_check_branch
      %104 = sbr.rel (0) target = $region25
    $region24: #{mlp_forward.1} parent=1 // pred_region
      %106 = vsyncadd [#allocation3], 0
      %s108 = sshll.u32 [#allocation2], 4
      %s109 = int_to_ptr.vmem [resolvable:$true] %s108
      %s110 = sshll.u32 %s5, 4
      %s111 = int_to_ptr.hbm [resolvable:$true] %s110
      %113 = dma.vmem_to_hbm [thread:$0]  %s109, 128, %s111, [#allocation3]
    $region25: #{mlp_forward.1} parent=1 // pred_fallthru
      _
    // Predicated region
    $region26: #{mlp_forward.1} parent=1 // pred_check
      _
    $region27: #{mlp_forward.1} parent=1 // pred_check_branch
      %115 = sbr.rel (0) target = $region29
    $region28: #{mlp_forward.1} parent=1 // pred_region
      %117 = dma.done [#allocation3], 128
    $region29: #{mlp_forward.1} parent=1 // pred_fallthru
      _
    %118 = vsyncpa [#allocation3], 1

</llo_original>
